<compile_context>
chip_gen: v6e
topology: v6e:2x2x1
jax: 0.10.0
libtpu: 0.0.40
codegen_flags: <defaults>
</compile_context>

<pallas_src>
import functools

import jax
import jax.numpy as jnp
from jax import lax
from jax.experimental import pallas as pl
from jax.experimental.pallas import tpu as pltpu

LANES = 128
SUBLANES = 8
MAX_TILE_ROWS = 2048  # (2048,128) f32 = 1 MiB; 2 inputs x 2 bufs = 4 MiB VMEM


def _round_up(x, m):
    return ((x + m - 1) // m) * m


def _min_sublanes(dtype):
    # Sublane packing: 32-bit -> 8, 16-bit -> 16, 8-bit -> 32.
    bits = jnp.dtype(dtype).itemsize * 8
    return max(SUBLANES, 256 // bits)


def _focal_kernel(pred_ref, target_ref, sum_ref, cnt_ref, *,
                  gamma, alpha, ignore_index, tile_rows, rows, rem, nblocks):
    x = pred_ref[...].astype(jnp.float32)
    t_raw = target_ref[...].astype(jnp.float32)

    valid = t_raw != jnp.float32(ignore_index)
    t = jnp.where(valid, t_raw, 0.0)

    # Stable BCE-with-logits: logpt = max(x,0) - x*t + log1p(exp(-|x|)).
    e = jnp.exp(-jnp.abs(x))
    logpt = jnp.maximum(x, 0.0) - x * t + jnp.log1p(e)

    # 1 - pt without ever forming pt and without an f32 divide:
    #   1 - pt = where(xor(t>=0.5, x>=0), 1, e) / (1 + e)
    # (pt = sigmoid(x) if t==1 else 1-sigmoid(x); exact for the binary {0,1}
    #  targets a multi-label loss consumes, matching the reference
    #  pt = exp(-logpt) for such targets.)
    omp_num = jnp.where(jnp.logical_xor(t >= 0.5, x >= 0.0), 1.0, e)
    one_minus_pt = omp_num * pl.reciprocal(1.0 + e, approx=True)

    if gamma == 2.0:      # default: square instead of pow -> exp(gamma*log(.))
        focal_term = one_minus_pt * one_minus_pt
    elif gamma == 1.0:
        focal_term = one_minus_pt
    elif gamma == 0.0:
        focal_term = jnp.ones_like(one_minus_pt)
    else:
        # Clamp keeps the pow lowering away from log(0) when pt rounds to 1.
        focal_term = jnp.maximum(one_minus_pt, 1e-30) ** gamma

    loss = focal_term * logpt
    if alpha != 0.5:
        # alpha*t + (1-alpha)*(1-t) == (1-alpha) + (2*alpha-1)*t  (2 VPU ops)
        loss = loss * ((1.0 - alpha) + (2.0 * alpha - 1.0) * t)
    # alpha == 0.5: the constant 0.5 factor is folded into the wrapper scale.

    loss = jnp.where(valid, loss, 0.0)
    cnt = jnp.where(valid, 1.0, 0.0)

    def fold(v):
        # (tile_rows,128) -> (8,128): vreg-aligned reshape + elementwise adds
        # (pure VPU), no cross-lane XLU reduce in the hot loop.
        return v.reshape(tile_rows // SUBLANES, SUBLANES, LANES).sum(axis=0)

    last_can_be_partial = (rows % tile_rows != 0) or (rem != 0)
    if not last_can_be_partial:
        # Static decision: every block is full -> no index/mask math at all.
        sum_ref[...] = fold(loss)
        cnt_ref[...] = fold(cnt)
    else:
        i = pl.program_id(0)
        is_last = i == nblocks - 1

        @pl.when(jnp.logical_not(is_last))
        def _():
            sum_ref[...] = fold(loss)
            cnt_ref[...] = fold(cnt)

        @pl.when(is_last)
        def _():
            # Row-level bound plus a lane check on the single boundary row;
            # avoids a flat int32 element index (no overflow for huge inputs).
            row_ids = lax.broadcasted_iota(jnp.int32, (tile_rows, LANES), 0)
            lane_ids = lax.broadcasted_iota(jnp.int32, (tile_rows, LANES), 1)
            grow = i * tile_rows + row_ids           # global row index
            last_row = rows - 1
            lane_lim = LANES if rem == 0 else rem
            in_bounds = jnp.logical_or(
                grow < last_row,
                jnp.logical_and(grow == last_row, lane_ids < lane_lim))
            # jnp.where is a select: garbage (NaN/Inf) from the padded tail of
            # the partial block never reaches the partial sums.
            sum_ref[...] = fold(jnp.where(in_bounds, loss, 0.0))
            cnt_ref[...] = fold(jnp.where(in_bounds, cnt, 0.0))


def multilabel_focal_loss(pred, target, *, gamma=2.0, alpha=0.5,
                          loss_weight=1.0, ignore_index=255):
    """Pallas equivalent of MultiLabelFocalLoss(use_sigmoid=True, reduction='mean')."""
    assert pred.shape == target.shape, "pred shape should equal target shape"

    # Keep native (possibly narrow) dtypes end-to-end; the kernel casts to f32.
    p_flat = pred.reshape(-1)
    t_flat = target.reshape(-1)
    n = p_flat.shape[0]

    # Minimal pad only when the flat length isn't lane-divisible; the
    # in-kernel last-block mask makes the pad values irrelevant.
    rem = n % LANES
    if rem:
        pad = LANES - rem
        p_flat = jnp.pad(p_flat, (0, pad))
        t_flat = jnp.pad(t_flat, (0, pad))

    rows = p_flat.shape[0] // LANES
    p2d = p_flat.reshape(rows, LANES)
    t2d = t_flat.reshape(rows, LANES)

    # Minimum tile rows respecting sublane packing of the narrowest input.
    sub_min = max(_min_sublanes(p2d.dtype), _min_sublanes(t2d.dtype))

    # Tile sizing: big blocks for low per-step overhead, but at least 2 (and
    # preferably an even number of) blocks so v7x's two TensorCores both get
    # work on the "parallel" grid axis.
    nb = max(1, pl.cdiv(rows, MAX_TILE_ROWS))
    if rows > sub_min:
        nb = max(nb, 2)
    if nb > 1 and nb % 2:
        nb += 1
    tile_rows = max(sub_min, _round_up(pl.cdiv(rows, nb), sub_min))
    nblocks = pl.cdiv(rows, tile_rows)

    kernel = functools.partial(
        _focal_kernel, gamma=float(gamma), alpha=float(alpha),
        ignore_index=ignore_index, tile_rows=tile_rows, rows=rows, rem=rem,
        nblocks=nblocks)

    sum_part, cnt_part = pl.pallas_call(
        kernel,
        out_shape=(
            jax.ShapeDtypeStruct((nblocks * SUBLANES, LANES), jnp.float32),
            jax.ShapeDtypeStruct((nblocks * SUBLANES, LANES), jnp.float32),
        ),
        grid_spec=pltpu.PrefetchScalarGridSpec(
            num_scalar_prefetch=0,
            grid=(nblocks,),
            in_specs=[
                pl.BlockSpec((tile_rows, LANES), lambda i: (i, 0)),
                pl.BlockSpec((tile_rows, LANES), lambda i: (i, 0)),
            ],
            out_specs=[
                pl.BlockSpec((SUBLANES, LANES), lambda i: (i, 0)),
                pl.BlockSpec((SUBLANES, LANES), lambda i: (i, 0)),
            ],
        ),
        compiler_params=pltpu.CompilerParams(
            dimension_semantics=("parallel",),
            vmem_limit_bytes=32 * 1024 * 1024,
        ),
    )(p2d, t2d)

    loss_sum = jnp.sum(sum_part)
    valid_cnt = jnp.sum(cnt_part)

    scale = float(loss_weight)
    if float(alpha) == 0.5:
        scale *= 0.5  # constant per-element weight folded out of the kernel
    # Matches PyTorch semantics: mean over an empty valid set -> NaN.
    return jnp.float32(scale) * loss_sum / valid_cnt


def _reference(pred, target, *, gamma=2.0, alpha=0.5, loss_weight=1.0,
               ignore_index=255):
    # Pure-JAX reference with the same masked-mean semantics as the module.
    x = pred.reshape(-1).astype(jnp.float32)
    t = target.reshape(-1).astype(jnp.float32)
    valid = t != ignore_index
    t = jnp.where(valid, t, 0.0)
    logpt = jnp.maximum(x, 0.0) - x * t + jnp.log1p(jnp.exp(-jnp.abs(x)))
    pt = jnp.exp(-logpt)
    loss = (1.0 - pt) ** gamma * logpt
    loss = loss * (alpha * t + (1.0 - alpha) * (1.0 - t))
    loss = jnp.where(valid, loss, 0.0)
    return loss_weight * jnp.sum(loss) / jnp.sum(valid.astype(jnp.float32))


if __name__ == "__main__":
    key = jax.random.PRNGKey(0)
    k1, k2, k3, k4, k5, k6 = jax.random.split(key, 6)

    # Case 1: NCHW seg-head shape, lane-divisible (even grid, unmasked path).
    N, C, H, W = 2, 4, 16, 16
    pred = jax.random.normal(k1, (N, C, H, W), dtype=jnp.float32)
    target = jax.random.bernoulli(k2, 0.3, (N, C, H, W)).astype(jnp.float32)
    ignore_mask = jax.random.bernoulli(k3, 0.1, (N, C, H, W))
    target = jnp.where(ignore_mask, jnp.float32(255.0), target)

    out = multilabel_focal_loss(pred, target, gamma=2.0, alpha=0.5,
                                loss_weight=1.0, ignore_index=255)
    out = jax.block_until_ready(out)
    ref = jax.block_until_ready(_reference(pred, target))
    # rtol loosened slightly vs 1e-4 to cover the EUP approx-reciprocal.
    assert jnp.allclose(out, ref, rtol=1e-3, atol=1e-6), (out, ref)

    # Case 2: ragged shape exercising the lane-pad + partial-last-block mask.
    shp = (2, 3, 17, 19)
    pred2 = jax.random.normal(k4, shp, dtype=jnp.float32)
    target2 = jax.random.bernoulli(k5, 0.4, shp).astype(jnp.float32)
    target2 = jnp.where(jax.random.bernoulli(k6, 0.15, shp),
                        jnp.float32(255.0), target2)
    out2 = jax.block_until_ready(multilabel_focal_loss(pred2, target2))
    ref2 = jax.block_until_ready(_reference(pred2, target2))
    assert jnp.allclose(out2, ref2, rtol=1e-3, atol=1e-6), (out2, ref2)

    print("KERNEL_OK")
</pallas_src>

<mosaic_0001>
module attributes {stable_mosaic.version = 11 : i64} {
  func.func @_focal_kernel(%arg0: i32, %arg1: memref<8x128xf32, #tpu.memory_space<vmem>>, %arg2: memref<8x128xf32, #tpu.memory_space<vmem>>, %arg3: memref<8x128xf32, #tpu.memory_space<vmem>>, %arg4: memref<8x128xf32, #tpu.memory_space<vmem>>) attributes {dimension_semantics = [#tpu.dimension_semantics<parallel>], iteration_bounds = array<i64: 2>, scalar_prefetch = 0 : i64, scratch_operands = 0 : i64, tpu.core_type = #tpu.core_type<tc>, window_params = [{transform_indices = @transform_0, window_bounds = array<i64: 8, 128>}, {transform_indices = @transform_1, window_bounds = array<i64: 8, 128>}, {transform_indices = @transform_2, window_bounds = array<i64: 8, 128>}, {transform_indices = @transform_3, window_bounds = array<i64: 8, 128>}]} {
    %c0 = arith.constant 0 : index
    %c0_0 = arith.constant 0 : index
    %0 = vector.load %arg1[%c0, %c0_0] : memref<8x128xf32, #tpu.memory_space<vmem>>, vector<8x128xf32>
    %c0_1 = arith.constant 0 : index
    %c0_2 = arith.constant 0 : index
    %1 = vector.load %arg2[%c0_1, %c0_2] : memref<8x128xf32, #tpu.memory_space<vmem>>, vector<8x128xf32>
    %cst = arith.constant 2.550000e+02 : f32
    %2 = vector.broadcast %cst : f32 to vector<8x128xf32>
    %3 = arith.cmpf one, %1, %2 : vector<8x128xf32>
    %cst_3 = arith.constant 0.000000e+00 : f32
    %4 = vector.broadcast %cst_3 : f32 to vector<8x128xf32>
    %5 = arith.select %3, %1, %4 : vector<8x128xi1>, vector<8x128xf32>
    %6 = math.absf %0 : vector<8x128xf32>
    %cst_4 = arith.constant 0.000000e+00 : f32
    %7 = vector.broadcast %cst_4 : f32 to vector<8x128xf32>
    %8 = arith.subf %7, %6 : vector<8x128xf32>
    %9 = math.exp %8 : vector<8x128xf32>
    %cst_5 = arith.constant 0.000000e+00 : f32
    %10 = vector.broadcast %cst_5 : f32 to vector<8x128xf32>
    %11 = arith.maximumf %0, %10 : vector<8x128xf32>
    %12 = arith.mulf %0, %5 : vector<8x128xf32>
    %13 = arith.subf %11, %12 : vector<8x128xf32>
    %14 = math.log1p %9 : vector<8x128xf32>
    %15 = arith.addf %13, %14 : vector<8x128xf32>
    %cst_6 = arith.constant 5.000000e-01 : f32
    %16 = vector.broadcast %cst_6 : f32 to vector<8x128xf32>
    %17 = arith.cmpf oge, %5, %16 : vector<8x128xf32>
    %cst_7 = arith.constant 0.000000e+00 : f32
    %18 = vector.broadcast %cst_7 : f32 to vector<8x128xf32>
    %19 = arith.cmpf oge, %0, %18 : vector<8x128xf32>
    %20 = arith.xori %17, %19 : vector<8x128xi1>
    %cst_8 = arith.constant 1.000000e+00 : f32
    %21 = vector.broadcast %cst_8 : f32 to vector<8x128xf32>
    %22 = arith.select %20, %21, %9 : vector<8x128xi1>, vector<8x128xf32>
    %cst_9 = arith.constant 1.000000e+00 : f32
    %23 = vector.broadcast %cst_9 : f32 to vector<8x128xf32>
    %24 = arith.addf %23, %9 : vector<8x128xf32>
    %25 = tpu.reciprocal %24 {approx = true} : vector<8x128xf32> -> vector<8x128xf32>
    %26 = arith.mulf %22, %25 : vector<8x128xf32>
    %27 = arith.mulf %26, %26 : vector<8x128xf32>
    %28 = arith.mulf %27, %15 : vector<8x128xf32>
    %cst_10 = arith.constant 0.000000e+00 : f32
    %29 = vector.broadcast %cst_10 : f32 to vector<8x128xf32>
    %30 = arith.select %3, %28, %29 : vector<8x128xi1>, vector<8x128xf32>
    %cst_11 = arith.constant 1.000000e+00 : f32
    %cst_12 = arith.constant 0.000000e+00 : f32
    %31 = vector.broadcast %cst_11 : f32 to vector<8x128xf32>
    %32 = vector.broadcast %cst_12 : f32 to vector<8x128xf32>
    %33 = arith.select %3, %31, %32 : vector<8x128xi1>, vector<8x128xf32>
    %34 = vector.shape_cast %30 : vector<8x128xf32> to vector<1x8x128xf32>
    %cst_13 = arith.constant dense<0.000000e+00> : vector<8x128xf32>
    %35 = vector.multi_reduction <add>, %34, %cst_13 [0] : vector<1x8x128xf32> to vector<8x128xf32>
    %c0_14 = arith.constant 0 : index
    %c0_15 = arith.constant 0 : index
    %36 = vector.load %arg3[%c0_14, %c0_15] : memref<8x128xf32, #tpu.memory_space<vmem>>, vector<8x128xf32>
    tpu.vector_store %arg3[%c0_14, %c0_15], %35 {strides = array<i32>} : memref<8x128xf32, #tpu.memory_space<vmem>>, vector<8x128xf32>,
    %37 = vector.shape_cast %33 : vector<8x128xf32> to vector<1x8x128xf32>
    %cst_16 = arith.constant dense<0.000000e+00> : vector<8x128xf32>
    %38 = vector.multi_reduction <add>, %37, %cst_16 [0] : vector<1x8x128xf32> to vector<8x128xf32>
    %c0_17 = arith.constant 0 : index
    %c0_18 = arith.constant 0 : index
    %39 = vector.load %arg4[%c0_17, %c0_18] : memref<8x128xf32, #tpu.memory_space<vmem>>, vector<8x128xf32>
    tpu.vector_store %arg4[%c0_17, %c0_18], %38 {strides = array<i32>} : memref<8x128xf32, #tpu.memory_space<vmem>>, vector<8x128xf32>,
    return
  }
  func.func @transform_0(%arg0: i32) -> (i32, i32) {
    %c0_i32 = arith.constant 0 : i32
    %c0_i32_0 = arith.constant 0 : i32
    return %arg0, %c0_i32 : i32, i32
  }
  func.func @transform_1(%arg0: i32) -> (i32, i32) {
    %c0_i32 = arith.constant 0 : i32
    %c0_i32_0 = arith.constant 0 : i32
    return %arg0, %c0_i32 : i32, i32
  }
  func.func @transform_2(%arg0: i32) -> (i32, i32) {
    %c0_i32 = arith.constant 0 : i32
    %c0_i32_0 = arith.constant 0 : i32
    return %arg0, %c0_i32 : i32, i32
  }
  func.func @transform_3(%arg0: i32) -> (i32, i32) {
    %c0_i32 = arith.constant 0 : i32
    %c0_i32_0 = arith.constant 0 : i32
    return %arg0, %c0_i32 : i32, i32
  }
}

</mosaic_0001>

<llo_original>
// kernel: tpu_custom_call.1
$region0: #{tpu_custom_call.1}
  #allocation0 [shape = 'u32[]', space=smem, size = 0x4, offset = 0x4, fixed_abs, tag = 'smem constant byte address 0x4 - core index']
  #allocation1 [shape = 'u32[144,128]{1,0:T(1,128)}', space=vmem, size = 0x12000, scoped, tag = 'internal scratch']
  %s0 = inlined_call_operand.hbm [shape: f32[16,128], index: 0, kind: input, shape index: {}]
  %s1 = inlined_call_operand.hbm [shape: f32[16,128], index: 1, kind: input, shape index: {}]
  %s2 = inlined_call_operand.hbm [shape: f32[16,128], index: 2, kind: output, shape index: {0}]
  %s3 = inlined_call_operand.hbm [shape: f32[16,128], index: 3, kind: output, shape index: {1}]
  %4 = xla_tuple %s2, %s3
  %s5 = sld [smem:[#allocation0]]
  $region57: #{tpu_custom_call.1} parent=0
    _
  %s7 = ssub.s32 1, %s5
  %s8 = scalar_select 0, %s7, %s5
  $region1: #{tpu_custom_call.1} parent=0
    #allocation2 [shape = 'u8[8192]{0}', space=vmem, size = 0x2000, scoped, tag = 'input window, operand 0']
    #allocation3 [shape = 's32[2]{0}', space=sflag, size = 0x8, scoped, tag = 'scoped memory for tpu_custom_call.1']
    #allocation4 [shape = 's32[2]{0}', space=sflag, size = 0x8, scoped, tag = 'scoped memory for tpu_custom_call.1']
    #allocation5 [shape = 'u8[8192]{0}', space=vmem, size = 0x2000, scoped, tag = 'input window, operand 1']
    #allocation6 [shape = 's32[2]{0}', space=sflag, size = 0x8, scoped, tag = 'scoped memory for tpu_custom_call.1']
    #allocation7 [shape = 'u8[8192]{0}', space=vmem, size = 0x2000, scoped, tag = 'output window, operand 0']
    #allocation8 [shape = 'u8[8192]{0}', space=vmem, size = 0x2000, scoped, tag = 'output window, operand 1']
    #allocation9 [shape = 's32[2]{0}', space=sflag, size = 0x8, scoped, tag = 'scoped memory for tpu_custom_call.1']
    %9 = vsyncpa [#allocation3], 0
    %s10 = scalar_lea.sflag [#allocation3], 1
    %11 = vsyncpa %s10, 0
    %12 = vsyncpa [#allocation6], 0
    %s13 = scalar_lea.sflag [#allocation6], 1
    %14 = vsyncpa %s13, 0
    %15 = vsyncpa [#allocation4], 0
    %s16 = scalar_lea.sflag [#allocation4], 1
    %17 = vsyncpa %s16, 0
    %18 = vsyncpa [#allocation9], 0
    %s19 = scalar_lea.sflag [#allocation9], 1
    %20 = vsyncpa %s19, 0
    loop: start=0, step=1, limit=4
    $region2: #{tpu_custom_call.1} parent=1 // loop_pre_header
      _
    $region3: #{tpu_custom_call.1} parent=1 // loop_header
      %s22 = sphi 0, %s26
      %p23 = scmp.ge.s32.totalorder %s22, 4
      %s32 = sphi 0, %s34
      %s35 = sphi 0, %s32
      %s36 = sphi 0, %s35
      %s52 = sphi 0, %s36
      %s58 = sphi 0, %s60
      %s61 = sphi 0, %s58
      %s62 = sphi 0, %s61
      %s78 = sphi 0, %s62
      %s84 = sphi 0, %s86
      %s87 = sphi 0, %s84
      %s88 = sphi 0, %s87
      %s104 = sphi 0, %s88
      %s110 = sphi 0, %s112
      %s113 = sphi 0, %s110
      %s114 = sphi 0, %s113
      %s130 = sphi 0, %s114
    $region4: #{tpu_custom_call.1} parent=1 // loop_header_branch
      %25 = sbr.rel (%p23) target = $region8
    $region5: #{tpu_custom_call.1} parent=1 // loop_body
      %s27 = ssub.s32 %s22, 1
      %s28 = ssub.s32 %s22, 2
      %s29 = sadd.s32 %s22, 1
      %s30 = ssub.s32 %s22, %s29
      %p31 = scmp.eq.s32.totalorder %s30, 0
      %s33 = sadd.s32 %s32, 1
      %s34 = scalar_select %p31, %s32, %s33
      %p37 = pneg %p31
      %p38 = scmp.eq.s32.totalorder %s22, 1
      %p39 = por %p37, %p38
      %p40 = scmp.ne.s32.totalorder %s32, %s35
      %p41 = scmp.eq.s32.totalorder %s22, 0
      %p42 = por %p40, %p41
      %p43 = scmp.ne.s32.totalorder %s32, %s35
      %p44 = scmp.eq.s32.totalorder %s27, 1
      %p45 = por %p43, %p44
      %p46 = scmp.ne.s32.totalorder %s35, %s36
      %p47 = scmp.eq.s32.totalorder %s27, 0
      %p48 = por %p46, %p47
      %p49 = scmp.ne.s32.totalorder %s35, %s36
      %p50 = scmp.eq.s32.totalorder %s28, 1
      %p51 = por %p49, %p50
      %p53 = scmp.ne.s32.totalorder %s36, %s52
      %p54 = scmp.eq.s32.totalorder %s28, 0
      %p55 = por %p53, %p54
      %s56 = ssub.s32 %s22, %s29
      %p57 = scmp.eq.s32.totalorder %s56, 0
      %s59 = sadd.s32 %s58, 1
      %s60 = scalar_select %p57, %s58, %s59
      %p63 = pneg %p57
      %p64 = scmp.eq.s32.totalorder %s22, 1
      %p65 = por %p63, %p64
      %p66 = scmp.ne.s32.totalorder %s58, %s61
      %p67 = scmp.eq.s32.totalorder %s22, 0
      %p68 = por %p66, %p67
      %p69 = scmp.ne.s32.totalorder %s58, %s61
      %p70 = scmp.eq.s32.totalorder %s27, 1
      %p71 = por %p69, %p70
      %p72 = scmp.ne.s32.totalorder %s61, %s62
      %p73 = scmp.eq.s32.totalorder %s27, 0
      %p74 = por %p72, %p73
      %p75 = scmp.ne.s32.totalorder %s61, %s62
      %p76 = scmp.eq.s32.totalorder %s28, 1
      %p77 = por %p75, %p76
      %p79 = scmp.ne.s32.totalorder %s62, %s78
      %p80 = scmp.eq.s32.totalorder %s28, 0
      %p81 = por %p79, %p80
      %s82 = ssub.s32 %s22, %s29
      %p83 = scmp.eq.s32.totalorder %s82, 0
      %s85 = sadd.s32 %s84, 1
      %s86 = scalar_select %p83, %s84, %s85
      %p89 = pneg %p83
      %p90 = scmp.eq.s32.totalorder %s22, 1
      %p91 = por %p89, %p90
      %p92 = scmp.ne.s32.totalorder %s84, %s87
      %p93 = scmp.eq.s32.totalorder %s22, 0
      %p94 = por %p92, %p93
      %p95 = scmp.ne.s32.totalorder %s84, %s87
      %p96 = scmp.eq.s32.totalorder %s27, 1
      %p97 = por %p95, %p96
      %p98 = scmp.ne.s32.totalorder %s87, %s88
      %p99 = scmp.eq.s32.totalorder %s27, 0
      %p100 = por %p98, %p99
      %p101 = scmp.ne.s32.totalorder %s87, %s88
      %p102 = scmp.eq.s32.totalorder %s28, 1
      %p103 = por %p101, %p102
      %p105 = scmp.ne.s32.totalorder %s88, %s104
      %p106 = scmp.eq.s32.totalorder %s28, 0
      %p107 = por %p105, %p106
      %s108 = ssub.s32 %s22, %s29
      %p109 = scmp.eq.s32.totalorder %s108, 0
      %s111 = sadd.s32 %s110, 1
      %s112 = scalar_select %p109, %s110, %s111
      %p115 = pneg %p109
      %p116 = scmp.eq.s32.totalorder %s22, 1
      %p117 = por %p115, %p116
      %p118 = scmp.ne.s32.totalorder %s110, %s113
      %p119 = scmp.eq.s32.totalorder %s22, 0
      %p120 = por %p118, %p119
      %p121 = scmp.ne.s32.totalorder %s110, %s113
      %p122 = scmp.eq.s32.totalorder %s27, 1
      %p123 = por %p121, %p122
      %p124 = scmp.ne.s32.totalorder %s113, %s114
      %p125 = scmp.eq.s32.totalorder %s27, 0
      %p126 = por %p124, %p125
      %p127 = scmp.ne.s32.totalorder %s113, %s114
      %p128 = scmp.eq.s32.totalorder %s28, 1
      %p129 = por %p127, %p128
      %p131 = scmp.ne.s32.totalorder %s114, %s130
      %p132 = scmp.eq.s32.totalorder %s28, 0
      %p133 = por %p131, %p132
      %p134 = scmp.le.s32.totalorder 1, %s22
      %p135 = scmp.lt.s32.totalorder %s22, 3
      %p136 = pnand %p134, %p135
      %p137 = pneg %p136
      // Predicated region
      $region9: #{tpu_custom_call.1} parent=5 // pred_check
        _
      $region10: #{tpu_custom_call.1} parent=5 // pred_check_branch
        %139 = sbr.rel (%p136) target = $region12
      $region11: #{tpu_custom_call.1} parent=5 // pred_region
        %s140 = ssub.s32 %s22, 1
      $region12: #{tpu_custom_call.1} parent=5 // pred_fallthru
        _
      %p141 = scmp.lt.s32.totalorder %s22, 2
      // Predicated region
      $region13: #{tpu_custom_call.1} parent=5 // pred_check
        %p142 = pneg %p141
      $region14: #{tpu_custom_call.1} parent=5 // pred_check_branch
        %144 = sbr.rel (%p142) target = $region16
      $region15: #{tpu_custom_call.1} parent=5 // pred_region
        // Predicated region
        $region17: #{tpu_custom_call.1} parent=15 // pred_check
          %p145 = pneg %p42
        $region18: #{tpu_custom_call.1} parent=15 // pred_check_branch
          %147 = sbr.rel (%p145) target = $region20
        $region19: #{tpu_custom_call.1} parent=15 // pred_region
          %s148 = sand.u32 %s32, 1
          %s149 = scalar_lea.sflag [#allocation3], %s148
          %s150 = sand.u32 %s32, 1
          %s151 = smul.addr %s150, 8
          %s152 = scalar_lea.vmem [#allocation2], %s151
          %s154 = ssub.s32 128, 128
          %155 = vsyncadd %s149, %s154
          %s156 = smul.addr %s22, 128
          %s157 = scalar_lea.hbm %s0, %s156
          %s159 = sshll.u32 %s152, 4
          %s160 = int_to_ptr.vmem [resolvable:$true] %s159
          %162 = dma.hbm_to_vmem [thread:$0]  %s157, 128, %s160, %s149
        $region20: #{tpu_custom_call.1} parent=15 // pred_fallthru
          _
        // Predicated region
        $region21: #{tpu_custom_call.1} parent=15 // pred_check
          %p163 = pneg %p68
        $region22: #{tpu_custom_call.1} parent=15 // pred_check_branch
          %165 = sbr.rel (%p163) target = $region24
        $region23: #{tpu_custom_call.1} parent=15 // pred_region
          %s166 = sand.u32 %s58, 1
          %s167 = scalar_lea.sflag [#allocation6], %s166
          %s168 = sand.u32 %s58, 1
          %s169 = smul.addr %s168, 8
          %s170 = scalar_lea.vmem [#allocation5], %s169
          %s172 = ssub.s32 128, 128
          %173 = vsyncadd %s167, %s172
          %s174 = smul.addr %s22, 128
          %s175 = scalar_lea.hbm %s1, %s174
          %s177 = sshll.u32 %s170, 4
          %s178 = int_to_ptr.vmem [resolvable:$true] %s177
          %180 = dma.hbm_to_vmem [thread:$0]  %s175, 128, %s178, %s167
        $region24: #{tpu_custom_call.1} parent=15 // pred_fallthru
          _
      $region16: #{tpu_custom_call.1} parent=5 // pred_fallthru
        _
      %p181 = scmp.le.s32.totalorder 1, %s22
      %p182 = scmp.lt.s32.totalorder %s22, 3
      %p183 = pnand %p181, %p182
      %p184 = pneg %p183
      // Predicated region
      $region25: #{tpu_custom_call.1} parent=5 // pred_check
        _
      $region26: #{tpu_custom_call.1} parent=5 // pred_check_branch
        %186 = sbr.rel (%p183) target = $region28
      $region27: #{tpu_custom_call.1} parent=5 // pred_region
        %s187 = ssub.s32 %s22, 1
        %s188 = sand.u32 %s35, 1
        %s189 = scalar_lea.sflag [#allocation3], %s188
        %s190 = sand.u32 %s35, 1
        %s191 = smul.addr %s190, 8
        %s192 = scalar_lea.vmem [#allocation2], %s191
        // Predicated region
        $region29: #{tpu_custom_call.1} parent=27 // pred_check
          %p193 = pneg %p48
        $region30: #{tpu_custom_call.1} parent=27 // pred_check_branch
          %195 = sbr.rel (%p193) target = $region32
        $region31: #{tpu_custom_call.1} parent=27 // pred_region
          %196 = dma.done %s189, 128
        $region32: #{tpu_custom_call.1} parent=27 // pred_fallthru
          _
        %s197 = sand.u32 %s61, 1
        %s198 = scalar_lea.sflag [#allocation6], %s197
        %s199 = sand.u32 %s61, 1
        %s200 = smul.addr %s199, 8
        %s201 = scalar_lea.vmem [#allocation5], %s200
        // Predicated region
        $region33: #{tpu_custom_call.1} parent=27 // pred_check
          %p202 = pneg %p74
        $region34: #{tpu_custom_call.1} parent=27 // pred_check_branch
          %204 = sbr.rel (%p202) target = $region36
        $region35: #{tpu_custom_call.1} parent=27 // pred_region
          %205 = dma.done %s198, 128
        $region36: #{tpu_custom_call.1} parent=27 // pred_fallthru
          _
        %s206 = sand.u32 %s35, 1
        %s207 = scalar_lea.sflag [#allocation3], %s206
        %s208 = sand.u32 %s35, 1
        %s209 = smul.addr %s208, 8
        %s210 = scalar_lea.vmem [#allocation2], %s209
        %p211 = pneg %p48
        %p212 = pneg %p45
        %s213 = sand.u32 %s61, 1
        %s214 = scalar_lea.sflag [#allocation6], %s213
        %s215 = sand.u32 %s61, 1
        %s216 = smul.addr %s215, 8
        %s217 = scalar_lea.vmem [#allocation5], %s216
        %p218 = pneg %p74
        %p219 = pneg %p71
        %p220 = pneg %p100
        %p221 = pneg %p97
        %s222 = sand.u32 %s87, 1
        %s223 = scalar_lea.sflag [#allocation4], %s222
        %s224 = sand.u32 %s87, 1
        %s225 = smul.addr %s224, 8
        %s226 = scalar_lea.vmem [#allocation7], %s225
        %p227 = pneg %p126
        %p228 = pneg %p123
        %s229 = sand.u32 %s113, 1
        %s230 = scalar_lea.sflag [#allocation9], %s229
        %s231 = sand.u32 %s113, 1
        %s232 = smul.addr %s231, 8
        %s233 = scalar_lea.vmem [#allocation8], %s232
        %v234 = vld [vmem:[%s192] sm:$0xff]
        %v235 = vld [vmem:[%s201] sm:$0xff]
        %vm236 = vcmp.ne.f32.partialorder %v235, 255.0
        %v237 = vsel %vm236, %v235, 0.0
        %v238 = vand.u32 2147483647, %v234
        %v239 = vsub.f32 0.0, %v238
        %v240 = vmul.f32 %v239, 1.442695
        %v241 = vpow.pop %v240
        %v242 = vmax.f32 %v234, 0.0
        %v243 = vmul.f32 %v234, %v237
        %v244 = vsub.f32 %v242, %v243
        %v245 = vadd.f32 %v241, 1.0
        %v246 = vlog2.pop %v245
        %v247 = vmul.f32 %v246, 0.6931472
        %v248 = vmul.f32 -0.5, %v241
        %v249 = vadd.f32 %v248, 1.0
        %v250 = vmul.f32 %v249, %v241
        %v251 = vand.u32 2147483647, %v241
        %vm252 = vcmp.lt.f32.partialorder %v251, 0.0004427343
        %v253 = vsel %vm252, %v250, %v247
        %v254 = vadd.f32 %v244, %v253
        %vm255 = vcmp.ge.f32.partialorder %v237, 0.5
        %vm256 = vcmp.ge.f32.partialorder %v234, 0.0
        %vm257 = vmxor %vm255, %vm256
        %v258 = vsel %vm257, 1.0, %v241
        %v259 = vadd.f32 %v241, 1.0
        %v260 = vrcp.pop %v259
        %v261 = vmul.f32 %v258, %v260
        %v262 = vmul.f32 %v261, %v261
        %v263 = vmul.f32 %v262, %v254
        %v264 = vsel %vm236, %v263, 0.0
        %v265 = vsel %vm236, 1.0, 0.0
        %v266 = vadd.f32 %v264, 0.0
        %267 = vst [vmem:[%s226] sm:$0xff] %v266
        %v268 = vadd.f32 %v265, 0.0
        %269 = vst [vmem:[%s233] sm:$0xff] %v268
        %s270 = sand.u32 %s87, 1
        %s271 = scalar_lea.sflag [#allocation4], %s270
        %s272 = sand.u32 %s87, 1
        %s273 = smul.addr %s272, 8
        %s274 = scalar_lea.vmem [#allocation7], %s273
        %s275 = sand.u32 %s113, 1
        %s276 = scalar_lea.sflag [#allocation9], %s275
        %s277 = sand.u32 %s113, 1
        %s278 = smul.addr %s277, 8
        %s279 = scalar_lea.vmem [#allocation8], %s278
        // Predicated region
        $region37: #{tpu_custom_call.1} parent=27 // pred_check
          %p280 = pneg %p97
        $region38: #{tpu_custom_call.1} parent=27 // pred_check_branch
          %282 = sbr.rel (%p280) target = $region40
        $region39: #{tpu_custom_call.1} parent=27 // pred_region
          %s284 = ssub.s32 128, 128
          %285 = vsyncadd %s271, %s284
          %s286 = smul.addr %s27, 128
          %s287 = scalar_lea.hbm %s2, %s286
          %s289 = sshll.u32 %s274, 4
          %s290 = int_to_ptr.vmem [resolvable:$true] %s289
          %292 = dma.vmem_to_hbm [thread:$0]  %s290, 128, %s287, %s271
        $region40: #{tpu_custom_call.1} parent=27 // pred_fallthru
          _
        // Predicated region
        $region41: #{tpu_custom_call.1} parent=27 // pred_check
          %p293 = pneg %p123
        $region42: #{tpu_custom_call.1} parent=27 // pred_check_branch
          %295 = sbr.rel (%p293) target = $region44
        $region43: #{tpu_custom_call.1} parent=27 // pred_region
          %s297 = ssub.s32 128, 128
          %298 = vsyncadd %s276, %s297
          %s299 = smul.addr %s27, 128
          %s300 = scalar_lea.hbm %s3, %s299
          %s302 = sshll.u32 %s279, 4
          %s303 = int_to_ptr.vmem [resolvable:$true] %s302
          %305 = dma.vmem_to_hbm [thread:$0]  %s303, 128, %s300, %s276
        $region44: #{tpu_custom_call.1} parent=27 // pred_fallthru
          _
      $region28: #{tpu_custom_call.1} parent=5 // pred_fallthru
        _
      %p306 = scmp.le.s32.totalorder 2, %s22
      // Predicated region
      $region45: #{tpu_custom_call.1} parent=5 // pred_check
        %p307 = pneg %p306
      $region46: #{tpu_custom_call.1} parent=5 // pred_check_branch
        %309 = sbr.rel (%p307) target = $region48
      $region47: #{tpu_custom_call.1} parent=5 // pred_region
        %s310 = ssub.s32 %s22, 2
        // Predicated region
        $region49: #{tpu_custom_call.1} parent=47 // pred_check
          %p311 = pneg %p103
        $region50: #{tpu_custom_call.1} parent=47 // pred_check_branch
          %313 = sbr.rel (%p311) target = $region52
        $region51: #{tpu_custom_call.1} parent=47 // pred_region
          %s314 = sand.u32 %s88, 1
          %s315 = scalar_lea.sflag [#allocation4], %s314
          %s316 = sand.u32 %s88, 1
          %s317 = smul.addr %s316, 8
          %s318 = scalar_lea.vmem [#allocation7], %s317
          %319 = dma.done %s315, 128
        $region52: #{tpu_custom_call.1} parent=47 // pred_fallthru
          _
        // Predicated region
        $region53: #{tpu_custom_call.1} parent=47 // pred_check
          %p320 = pneg %p129
        $region54: #{tpu_custom_call.1} parent=47 // pred_check_branch
          %322 = sbr.rel (%p320) target = $region56
        $region55: #{tpu_custom_call.1} parent=47 // pred_region
          %s323 = sand.u32 %s114, 1
          %s324 = scalar_lea.sflag [#allocation9], %s323
          %s325 = sand.u32 %s114, 1
          %s326 = smul.addr %s325, 8
          %s327 = scalar_lea.vmem [#allocation8], %s326
          %328 = dma.done %s324, 128
        $region56: #{tpu_custom_call.1} parent=47 // pred_fallthru
          _
      $region48: #{tpu_custom_call.1} parent=5 // pred_fallthru
        _
    $region6: #{tpu_custom_call.1} parent=1 // loop_footer
      %s26 = sadd.s32 1, %s22
    $region7: #{tpu_custom_call.1} parent=1 // loop_footer_branch
      %21 = sbr.rel target = $region3
    $region8: #{tpu_custom_call.1} parent=1 // loop_exit
      _
    %329 = vsyncpa [#allocation3], 1
    %s330 = scalar_lea.sflag [#allocation3], 1
    %331 = vsyncpa %s330, 1
    %332 = vsyncpa [#allocation6], 1
    %s333 = scalar_lea.sflag [#allocation6], 1
    %334 = vsyncpa %s333, 1
    %335 = vsyncpa [#allocation4], 1
    %s336 = scalar_lea.sflag [#allocation4], 1
    %337 = vsyncpa %s336, 1
    %338 = vsyncpa [#allocation9], 1
    %s339 = scalar_lea.sflag [#allocation9], 1
    %340 = vsyncpa %s339, 1

</llo_original>
